<compile_context>
chip_gen: v6e
topology: v6e:2x2x1
jax: 0.10.0
libtpu: 0.0.40
codegen_flags: <defaults>
</compile_context>

<pallas_src>
import jax
import jax.numpy as jnp
from jax.experimental import pallas as pl
from jax.experimental.pallas import tpu as pltpu


def _round_up(x, m):
    return ((x + m - 1) // m) * m


def value_net_kernel(x_ref, w1_ref, b1_ref, w2_ref, b2_ref, w3_ref, b3_ref, o_ref):
    x = x_ref[...]                       # [TB, state_dim] f32

    if w1_ref.shape[0] == 1:
        # state_dim == 1: a K=1 contraction is a pure broadcast -> keep it on the
        # VPU instead of paying MXU push/drain latency for a useless vmatmul.
        h1 = x * w1_ref[...] + b1_ref[...]
    else:
        h1 = jnp.dot(x, w1_ref[...], preferred_element_type=jnp.float32) + b1_ref[...]
    h1 = jnp.maximum(h1, 0.0)

    # bf16 operands on the MXU, f32 accumulation; biases stay f32.
    h2 = jnp.dot(h1.astype(w2_ref.dtype), w2_ref[...],
                 preferred_element_type=jnp.float32) + b2_ref[...]
    h2 = jnp.maximum(h2, 0.0)

    q = jnp.dot(h2.astype(w3_ref.dtype), w3_ref[...],
                preferred_element_type=jnp.float32) + b3_ref[...]

    # w3/b3 are lane-padded to 128 so the final matmul is lane-dense on the MXU, but
    # only the real action_dim columns are written back to HBM (a few masked stores
    # per tile instead of 64x padded writeback).
    o_ref[...] = q[:, :o_ref.shape[1]].astype(o_ref.dtype)


def prepare_params(params):
    """One-time weight prep, hoisted out of the per-call path:
       - cast w2/w3 to bf16 for the MXU (f32 accumulation in-kernel),
       - zero-pad w3/b3 out-dim to a multiple of 128 lanes for the final matmul."""
    w1, b1, w2, b2, w3, b3 = params
    action_dim = w3.shape[1]
    out_pad = max(128, _round_up(action_dim, 128))
    if out_pad != action_dim:
        w3 = jnp.pad(w3, ((0, 0), (0, out_pad - action_dim)))
        b3 = jnp.pad(b3, ((0, 0), (0, out_pad - action_dim)))
    w2 = w2.astype(jnp.bfloat16)
    w3 = w3.astype(jnp.bfloat16)
    return (w1, b1, w2, b2, w3, b3), action_dim


def _choose_tiling(B, max_block=1024):
    """Pick (block_b, padded_B); block_b is a multiple of 8 (f32 sublane).
    - B < 128: a single grid step of round_up(B, 8) rows (work is trivial; avoids
      ceil(B/8) overhead-dominated tiny steps).
    - B >= 128: at least 2 (and an even number of) grid steps so the "parallel"
      batch axis gives work to both v7x TensorCores, tiles capped at max_block rows
      to amortize the ~0.35 us per-step overhead without pressuring v5e VMEM."""
    B = max(int(B), 1)
    b8 = _round_up(B, 8)
    if B < 128:
        return b8, b8
    n_tiles = max(2, pl.cdiv(b8, max_block))
    n_tiles = _round_up(n_tiles, 2)              # even grid length for 2 TCs
    block_b = _round_up(pl.cdiv(b8, n_tiles), 8)
    b_pad = _round_up(b8, block_b)
    return block_b, b_pad


def value_network_forward(state, prepped, *, block_b=None):
    """state: [B, state_dim] float32 -> q_values: [B, action_dim] float32.
    `prepped` is the result of prepare_params(params)."""
    (w1, b1, w2, b2, w3, b3), action_dim = prepped
    B, state_dim = state.shape
    hidden = w1.shape[1]
    out_pad = w3.shape[1]                        # lane-padded final width (>=128)

    if block_b is None:
        block_b, b_pad = _choose_tiling(B)
    else:
        block_b = _round_up(int(block_b), 8)
        b_pad = _round_up(B, block_b)

    x = state if b_pad == B else jnp.pad(state, ((0, b_pad - B), (0, 0)))
    grid = (b_pad // block_b,)

    resident = lambda i: (0, 0)                  # weights/biases: same block every step
    out = pl.pallas_call(
        value_net_kernel,
        out_shape=jax.ShapeDtypeStruct((b_pad, action_dim), jnp.float32),
        grid=grid,
        in_specs=[
            pl.BlockSpec((block_b, state_dim), lambda i: (i, 0)),   # x tile
            pl.BlockSpec((state_dim, hidden), resident),            # w1 (f32, tiny)
            pl.BlockSpec((1, hidden), resident),                    # b1
            pl.BlockSpec((hidden, hidden), resident),               # w2 (bf16)
            pl.BlockSpec((1, hidden), resident),                    # b2
            pl.BlockSpec((hidden, out_pad), resident),              # w3 (bf16, lane-padded)
            pl.BlockSpec((1, out_pad), resident),                   # b3 (lane-padded)
        ],
        # Narrow HBM writeback: full (unpadded) action_dim as the final block dim.
        out_specs=pl.BlockSpec((block_b, action_dim), lambda i: (i, 0)),
        compiler_params=pltpu.CompilerParams(
            dimension_semantics=("parallel",),        # shards batch grid across v7x's 2 TCs
            vmem_limit_bytes=32 * 1024 * 1024),       # headroom for big tiles on v5e
    )(x, w1, b1, w2, b2, w3, b3)

    return out[:B, :]


def init_params(key, state_dim, action_dim, hidden_dim=256):
    """Deterministic init mirroring nn.Linear default: U(-1/sqrt(fan_in), 1/sqrt(fan_in))."""
    def linear(k, fan_in, fan_out):
        kw, kb = jax.random.split(k)
        bound = 1.0 / jnp.sqrt(jnp.float32(fan_in))
        w = jax.random.uniform(kw, (fan_in, fan_out), jnp.float32, -bound, bound)
        b = jax.random.uniform(kb, (1, fan_out), jnp.float32, -bound, bound)
        return w, b

    k1, k2, k3 = jax.random.split(key, 3)
    w1, b1 = linear(k1, state_dim, hidden_dim)
    w2, b2 = linear(k2, hidden_dim, hidden_dim)
    w3, b3 = linear(k3, hidden_dim, action_dim)
    return (w1, b1, w2, b2, w3, b3)


if __name__ == "__main__":
    # Shapes implied by the module: state_dim=1 (env observation), action_dim=2, hidden_dim=256.
    state_dim, action_dim, hidden_dim = 1, 2, 256

    key = jax.random.PRNGKey(0)
    kp, kx1, kx2 = jax.random.split(key, 3)
    params = init_params(kp, state_dim, action_dim, hidden_dim)
    prepped = prepare_params(params)             # one-time weight prep (hoisted)

    def reference(s):
        # Plain-JAX reference mirroring the kernel's bf16 quantization of w2/w3 and of
        # the activations fed to the MXU (f32 accumulation).
        w1, b1, w2, b2, w3, b3 = params
        w2q = w2.astype(jnp.bfloat16).astype(jnp.float32)
        w3q = w3.astype(jnp.bfloat16).astype(jnp.float32)
        h1 = jnp.maximum(s @ w1 + b1, 0.0)
        h2 = jnp.maximum(h1.astype(jnp.bfloat16).astype(jnp.float32) @ w2q + b2, 0.0)
        return h2.astype(jnp.bfloat16).astype(jnp.float32) @ w3q + b3

    # Small batch (spec-implied usage): single grid step of 8 padded rows.
    state = jax.random.uniform(kx1, (2, state_dim), jnp.float32, 0.0, 300.0)
    q_values = value_network_forward(state, prepped)
    jax.block_until_ready(q_values)
    assert q_values.shape == (2, action_dim)
    assert jnp.allclose(q_values, reference(state), atol=5e-2, rtol=1e-2), (
        f"max abs err {jnp.max(jnp.abs(q_values - reference(state)))}")

    # Medium batch: exercises the multi-tile (>=2-step, parallel) grid and row padding.
    state2 = jax.random.uniform(kx2, (200, state_dim), jnp.float32, 0.0, 300.0)
    q2 = value_network_forward(state2, prepped)
    jax.block_until_ready(q2)
    assert q2.shape == (200, action_dim)
    assert jnp.allclose(q2, reference(state2), atol=5e-2, rtol=1e-2), (
        f"max abs err {jnp.max(jnp.abs(q2 - reference(state2)))}")

    print("KERNEL_OK")
</pallas_src>

<mosaic_0001>
module attributes {stable_mosaic.version = 11 : i64} {
  func.func @value_net_kernel(%arg0: i32, %arg1: memref<8x1xf32, #tpu.memory_space<vmem>>, %arg2: memref<1x256xf32, #tpu.memory_space<vmem>>, %arg3: memref<1x256xf32, #tpu.memory_space<vmem>>, %arg4: memref<256x256xbf16, #tpu.memory_space<vmem>>, %arg5: memref<1x256xf32, #tpu.memory_space<vmem>>, %arg6: memref<256x128xbf16, #tpu.memory_space<vmem>>, %arg7: memref<1x128xf32, #tpu.memory_space<vmem>>, %arg8: memref<8x2xf32, #tpu.memory_space<vmem>>) attributes {dimension_semantics = [#tpu.dimension_semantics<parallel>], iteration_bounds = array<i64: 1>, scalar_prefetch = 0 : i64, scratch_operands = 0 : i64, tpu.core_type = #tpu.core_type<tc>, window_params = [{transform_indices = @transform_0, window_bounds = array<i64: 8, 1>}, {pipeline_mode = #tpu.pipeline_mode<synchronous>, transform_indices = @transform_1, window_bounds = array<i64: 1, 256>}, {pipeline_mode = #tpu.pipeline_mode<synchronous>, transform_indices = @transform_2, window_bounds = array<i64: 1, 256>}, {pipeline_mode = #tpu.pipeline_mode<synchronous>, transform_indices = @transform_3, window_bounds = array<i64: 256, 256>}, {pipeline_mode = #tpu.pipeline_mode<synchronous>, transform_indices = @transform_4, window_bounds = array<i64: 1, 256>}, {pipeline_mode = #tpu.pipeline_mode<synchronous>, transform_indices = @transform_5, window_bounds = array<i64: 256, 128>}, {pipeline_mode = #tpu.pipeline_mode<synchronous>, transform_indices = @transform_6, window_bounds = array<i64: 1, 128>}, {transform_indices = @transform_7, window_bounds = array<i64: 8, 2>}]} {
    %c0 = arith.constant 0 : index
    %c0_0 = arith.constant 0 : index
    %0 = vector.load %arg1[%c0, %c0_0] : memref<8x1xf32, #tpu.memory_space<vmem>>, vector<8x1xf32>
    %c0_1 = arith.constant 0 : index
    %c0_2 = arith.constant 0 : index
    %1 = vector.load %arg2[%c0_1, %c0_2] : memref<1x256xf32, #tpu.memory_space<vmem>>, vector<1x256xf32>
    %2 = vector.broadcast %0 : vector<8x1xf32> to vector<8x256xf32>
    %3 = vector.broadcast %1 : vector<1x256xf32> to vector<8x256xf32>
    %4 = arith.mulf %2, %3 : vector<8x256xf32>
    %c0_3 = arith.constant 0 : index
    %c0_4 = arith.constant 0 : index
    %5 = vector.load %arg3[%c0_3, %c0_4] : memref<1x256xf32, #tpu.memory_space<vmem>>, vector<1x256xf32>
    %6 = vector.broadcast %5 : vector<1x256xf32> to vector<8x256xf32>
    %7 = arith.addf %4, %6 : vector<8x256xf32>
    %cst = arith.constant 0.000000e+00 : f32
    %8 = vector.broadcast %cst : f32 to vector<8x256xf32>
    %9 = arith.maximumf %7, %8 : vector<8x256xf32>
    %10 = arith.truncf %9 : vector<8x256xf32> to vector<8x256xbf16>
    %c0_5 = arith.constant 0 : index
    %c0_6 = arith.constant 0 : index
    %11 = vector.load %arg4[%c0_5, %c0_6] : memref<256x256xbf16, #tpu.memory_space<vmem>>, vector<256x256xbf16>
    %cst_7 = arith.constant dense<0.000000e+00> : vector<8x256xf32>
    %12 = tpu.matmul %10, %11, %cst_7 {dimension_numbers = #tpu.dot_dimension_numbers<[1], [0], [0], [1], [0, 0, 1, 1], [], []>} : vector<8x256xbf16>, vector<256x256xbf16>, vector<8x256xf32> -> vector<8x256xf32>
    %c0_8 = arith.constant 0 : index
    %c0_9 = arith.constant 0 : index
    %13 = vector.load %arg5[%c0_8, %c0_9] : memref<1x256xf32, #tpu.memory_space<vmem>>, vector<1x256xf32>
    %14 = vector.broadcast %13 : vector<1x256xf32> to vector<8x256xf32>
    %15 = arith.addf %12, %14 : vector<8x256xf32>
    %cst_10 = arith.constant 0.000000e+00 : f32
    %16 = vector.broadcast %cst_10 : f32 to vector<8x256xf32>
    %17 = arith.maximumf %15, %16 : vector<8x256xf32>
    %18 = arith.truncf %17 : vector<8x256xf32> to vector<8x256xbf16>
    %c0_11 = arith.constant 0 : index
    %c0_12 = arith.constant 0 : index
    %19 = vector.load %arg6[%c0_11, %c0_12] : memref<256x128xbf16, #tpu.memory_space<vmem>>, vector<256x128xbf16>
    %cst_13 = arith.constant dense<0.000000e+00> : vector<8x128xf32>
    %20 = tpu.matmul %18, %19, %cst_13 {dimension_numbers = #tpu.dot_dimension_numbers<[1], [0], [0], [1], [0, 0, 1, 1], [], []>} : vector<8x256xbf16>, vector<256x128xbf16>, vector<8x128xf32> -> vector<8x128xf32>
    %c0_14 = arith.constant 0 : index
    %c0_15 = arith.constant 0 : index
    %21 = vector.load %arg7[%c0_14, %c0_15] : memref<1x128xf32, #tpu.memory_space<vmem>>, vector<1x128xf32>
    %22 = vector.broadcast %21 : vector<1x128xf32> to vector<8x128xf32>
    %23 = arith.addf %20, %22 : vector<8x128xf32>
    %24 = vector.extract_strided_slice %23 {offsets = [0, 0], sizes = [8, 2], strides = [1, 1]} : vector<8x128xf32> to vector<8x2xf32>
    %c0_16 = arith.constant 0 : index
    %c0_17 = arith.constant 0 : index
    %25 = vector.load %arg8[%c0_16, %c0_17] : memref<8x2xf32, #tpu.memory_space<vmem>>, vector<8x2xf32>
    tpu.vector_store %arg8[%c0_16, %c0_17], %24 {strides = array<i32>} : memref<8x2xf32, #tpu.memory_space<vmem>>, vector<8x2xf32>,
    return
  }
  func.func @transform_0(%arg0: i32) -> (i32, i32) {
    %c0_i32 = arith.constant 0 : i32
    %c0_i32_0 = arith.constant 0 : i32
    return %arg0, %c0_i32 : i32, i32
  }
  func.func @transform_1(%arg0: i32) -> (i32, i32) {
    %c0_i32 = arith.constant 0 : i32
    %c0_i32_0 = arith.constant 0 : i32
    %c0_i32_1 = arith.constant 0 : i32
    return %c0_i32, %c0_i32_0 : i32, i32
  }
  func.func @transform_2(%arg0: i32) -> (i32, i32) {
    %c0_i32 = arith.constant 0 : i32
    %c0_i32_0 = arith.constant 0 : i32
    %c0_i32_1 = arith.constant 0 : i32
    return %c0_i32, %c0_i32_0 : i32, i32
  }
  func.func @transform_3(%arg0: i32) -> (i32, i32) {
    %c0_i32 = arith.constant 0 : i32
    %c0_i32_0 = arith.constant 0 : i32
    %c0_i32_1 = arith.constant 0 : i32
    return %c0_i32, %c0_i32_0 : i32, i32
  }
  func.func @transform_4(%arg0: i32) -> (i32, i32) {
    %c0_i32 = arith.constant 0 : i32
    %c0_i32_0 = arith.constant 0 : i32
    %c0_i32_1 = arith.constant 0 : i32
    return %c0_i32, %c0_i32_0 : i32, i32
  }
  func.func @transform_5(%arg0: i32) -> (i32, i32) {
    %c0_i32 = arith.constant 0 : i32
    %c0_i32_0 = arith.constant 0 : i32
    %c0_i32_1 = arith.constant 0 : i32
    return %c0_i32, %c0_i32_0 : i32, i32
  }
  func.func @transform_6(%arg0: i32) -> (i32, i32) {
    %c0_i32 = arith.constant 0 : i32
    %c0_i32_0 = arith.constant 0 : i32
    %c0_i32_1 = arith.constant 0 : i32
    return %c0_i32, %c0_i32_0 : i32, i32
  }
  func.func @transform_7(%arg0: i32) -> (i32, i32) {
    %c0_i32 = arith.constant 0 : i32
    %c0_i32_0 = arith.constant 0 : i32
    return %arg0, %c0_i32 : i32, i32
  }
}

</mosaic_0001>

<llo_original>
// kernel: tpu_custom_call.1
$region0: #{tpu_custom_call.1}
  #allocation0 [shape = 'u32[]', space=smem, size = 0x4, offset = 0x4, fixed_abs, tag = 'smem constant byte address 0x4 - core index']
  #allocation1 [shape = 'u32[144,128]{1,0:T(1,128)}', space=vmem, size = 0x12000, scoped, tag = 'internal scratch']
  %s0 = inlined_call_operand.vmem [shape: f32[8,1], index: 0, kind: input, shape index: {}]
  %s1 = inlined_call_operand.vmem [shape: f32[1,256], index: 1, kind: input, shape index: {}]
  %s2 = inlined_call_operand.vmem [shape: f32[1,256], index: 2, kind: input, shape index: {}]
  %s3 = inlined_call_operand.hbm [shape: bf16[256,256], index: 3, kind: input, shape index: {}]
  %s4 = inlined_call_operand.vmem [shape: f32[1,256], index: 4, kind: input, shape index: {}]
  %s5 = inlined_call_operand.hbm [shape: bf16[256,128], index: 5, kind: input, shape index: {}]
  %s6 = inlined_call_operand.vmem [shape: f32[1,128], index: 6, kind: input, shape index: {}]
  %s7 = inlined_call_operand.vmem [shape: f32[8,2], index: 7, kind: output, shape index: {}]
  %s8 = sld [smem:[#allocation0]]
  $region46: #{tpu_custom_call.1} parent=0
    _
  %s10 = ssub.s32 1, %s8
  %s11 = scalar_select 0, %s10, %s8
  $region1: #{tpu_custom_call.1} parent=0
    #allocation2 [shape = 'u8[131072]{0}', space=vmem, size = 0x20000, scoped, tag = 'input window, operand 3, single buffered']
    #allocation3 [shape = 's32[1]{0}', space=sflag, size = 0x4, scoped, tag = 'scoped memory for tpu_custom_call.1']
    #allocation4 [shape = 'u8[65536]{0}', space=vmem, size = 0x10000, scoped, tag = 'input window, operand 5, single buffered']
    #allocation5 [shape = 's32[1]{0}', space=sflag, size = 0x4, scoped, tag = 'scoped memory for tpu_custom_call.1']
    %12 = vsyncpa [#allocation3], 0
    %13 = vsyncpa [#allocation5], 0
    // Predicated region
    $region2: #{tpu_custom_call.1} parent=1 // pred_check
      _
    $region3: #{tpu_custom_call.1} parent=1 // pred_check_branch
      %15 = sbr.rel (0) target = $region5
    $region4: #{tpu_custom_call.1} parent=1 // pred_region
      _
    $region5: #{tpu_custom_call.1} parent=1 // pred_fallthru
      _
    // Predicated region
    $region6: #{tpu_custom_call.1} parent=1 // pred_check
      _
    $region7: #{tpu_custom_call.1} parent=1 // pred_check_branch
      %17 = sbr.rel (0) target = $region9
    $region8: #{tpu_custom_call.1} parent=1 // pred_region
      _
    $region9: #{tpu_custom_call.1} parent=1 // pred_fallthru
      _
    // Predicated region
    $region10: #{tpu_custom_call.1} parent=1 // pred_check
      _
    $region11: #{tpu_custom_call.1} parent=1 // pred_check_branch
      %19 = sbr.rel (0) target = $region13
    $region12: #{tpu_custom_call.1} parent=1 // pred_region
      _
    $region13: #{tpu_custom_call.1} parent=1 // pred_fallthru
      _
    // Predicated region
    $region14: #{tpu_custom_call.1} parent=1 // pred_check
      _
    $region15: #{tpu_custom_call.1} parent=1 // pred_check_branch
      %21 = sbr.rel (0) target = $region17
    $region16: #{tpu_custom_call.1} parent=1 // pred_region
      %s23 = ssub.s32 4096, 4096
      %24 = vsyncadd [#allocation3], %s23
      %s25 = sshll.u32 [#allocation2], 4
      %s26 = int_to_ptr.vmem [resolvable:$true] %s25
      %31 = dma.hbm_to_vmem [thread:$0]  %s3, 4096, %s26, [#allocation3], 128, 128, 8
    $region17: #{tpu_custom_call.1} parent=1 // pred_fallthru
      _
    // Predicated region
    $region18: #{tpu_custom_call.1} parent=1 // pred_check
      _
    $region19: #{tpu_custom_call.1} parent=1 // pred_check_branch
      %33 = sbr.rel (0) target = $region21
    $region20: #{tpu_custom_call.1} parent=1 // pred_region
      _
    $region21: #{tpu_custom_call.1} parent=1 // pred_fallthru
      _
    // Predicated region
    $region22: #{tpu_custom_call.1} parent=1 // pred_check
      _
    $region23: #{tpu_custom_call.1} parent=1 // pred_check_branch
      %35 = sbr.rel (0) target = $region25
    $region24: #{tpu_custom_call.1} parent=1 // pred_region
      %s37 = ssub.s32 2048, 2048
      %38 = vsyncadd [#allocation5], %s37
      %s39 = sshll.u32 [#allocation4], 4
      %s40 = int_to_ptr.vmem [resolvable:$true] %s39
      %45 = dma.hbm_to_vmem [thread:$0]  %s5, 2048, %s40, [#allocation5], 64, 64, 4
    $region25: #{tpu_custom_call.1} parent=1 // pred_fallthru
      _
    // Predicated region
    $region26: #{tpu_custom_call.1} parent=1 // pred_check
      _
    $region27: #{tpu_custom_call.1} parent=1 // pred_check_branch
      %47 = sbr.rel (0) target = $region29
    $region28: #{tpu_custom_call.1} parent=1 // pred_region
      _
    $region29: #{tpu_custom_call.1} parent=1 // pred_fallthru
      _
    // Predicated region
    $region30: #{tpu_custom_call.1} parent=1 // pred_check
      _
    $region31: #{tpu_custom_call.1} parent=1 // pred_check_branch
      %49 = sbr.rel (0) target = $region33
    $region32: #{tpu_custom_call.1} parent=1 // pred_region
      %50 = dma.done [#allocation3], 4096
    $region33: #{tpu_custom_call.1} parent=1 // pred_fallthru
      _
    // Predicated region
    $region34: #{tpu_custom_call.1} parent=1 // pred_check
      _
    $region35: #{tpu_custom_call.1} parent=1 // pred_check_branch
      %52 = sbr.rel (0) target = $region37
    $region36: #{tpu_custom_call.1} parent=1 // pred_region
      %53 = dma.done [#allocation5], 2048
    $region37: #{tpu_custom_call.1} parent=1 // pred_fallthru
      _
    %v55 = vld [vmem:[%s0] sm:$0xff]
    %v56 = vld [vmem:[%s1] sm:$0x3]
    %58 = vset.pattern.permute.xlu0 0
    %59 = vperm.xlu0 %58, %v55
    %v60 = vpop.permute.xlu0 %59
    %v63 = vlaneseq
    %v64 = vshrl.u32 %v63, 7
    %v65 = vsub.s32 0, %v64
    %v66 = vrot.slane %v56, %v65
    %v67 = vlaneseq
    %v68 = vshrl.u32 %v67, 7
    %v69 = vsub.s32 1, %v68
    %v70 = vrot.slane %v56, %v69
    %v73 = vmul.f32 %v60, %v66
    %v74 = vmul.f32 %v60, %v70
    %v75 = vld [vmem:[%s2] sm:$0x3]
    %v77 = vlaneseq
    %v78 = vshrl.u32 %v77, 7
    %v79 = vsub.s32 0, %v78
    %v80 = vrot.slane %v75, %v79
    %v81 = vlaneseq
    %v82 = vshrl.u32 %v81, 7
    %v83 = vsub.s32 1, %v82
    %v84 = vrot.slane %v75, %v83
    %v87 = vadd.f32 %v73, %v80
    %v88 = vadd.f32 %v74, %v84
    %v89 = vmax.f32 %v87, 0.0
    %v90 = vmax.f32 %v88, 0.0
    %v91 = vpack.c.bf16 %v89, %v89
    %v92 = vpack.c.bf16 %v90, %v90
    %v93 = vld [vmem:[#allocation2] sm:$0xff]
    %v94 = vld [vmem:[#allocation2 + $0x8] sm:$0xff]
    %v95 = vld [vmem:[#allocation2 + $0x10] sm:$0xff]
    %v96 = vld [vmem:[#allocation2 + $0x18] sm:$0xff]
    %v97 = vld [vmem:[#allocation2 + $0x20] sm:$0xff]
    %v98 = vld [vmem:[#allocation2 + $0x28] sm:$0xff]
    %v99 = vld [vmem:[#allocation2 + $0x30] sm:$0xff]
    %v100 = vld [vmem:[#allocation2 + $0x38] sm:$0xff]
    %v101 = vld [vmem:[#allocation2 + $0x40] sm:$0xff]
    %v102 = vld [vmem:[#allocation2 + $0x48] sm:$0xff]
    %v103 = vld [vmem:[#allocation2 + $0x50] sm:$0xff]
    %v104 = vld [vmem:[#allocation2 + $0x58] sm:$0xff]
    %v105 = vld [vmem:[#allocation2 + $0x60] sm:$0xff]
    %v106 = vld [vmem:[#allocation2 + $0x68] sm:$0xff]
    %v107 = vld [vmem:[#allocation2 + $0x70] sm:$0xff]
    %v108 = vld [vmem:[#allocation2 + $0x78] sm:$0xff]
    %v109 = vld [vmem:[#allocation2 + $0x80] sm:$0xff]
    %v110 = vld [vmem:[#allocation2 + $0x88] sm:$0xff]
    %v111 = vld [vmem:[#allocation2 + $0x90] sm:$0xff]
    %v112 = vld [vmem:[#allocation2 + $0x98] sm:$0xff]
    %v113 = vld [vmem:[#allocation2 + $0xa0] sm:$0xff]
    %v114 = vld [vmem:[#allocation2 + $0xa8] sm:$0xff]
    %v115 = vld [vmem:[#allocation2 + $0xb0] sm:$0xff]
    %v116 = vld [vmem:[#allocation2 + $0xb8] sm:$0xff]
    %v117 = vld [vmem:[#allocation2 + $0xc0] sm:$0xff]
    %v118 = vld [vmem:[#allocation2 + $0xc8] sm:$0xff]
    %v119 = vld [vmem:[#allocation2 + $0xd0] sm:$0xff]
    %v120 = vld [vmem:[#allocation2 + $0xd8] sm:$0xff]
    %v121 = vld [vmem:[#allocation2 + $0xe0] sm:$0xff]
    %v122 = vld [vmem:[#allocation2 + $0xe8] sm:$0xff]
    %v123 = vld [vmem:[#allocation2 + $0xf0] sm:$0xff]
    %v124 = vld [vmem:[#allocation2 + $0xf8] sm:$0xff]
    %v125 = vld [vmem:[%s4] sm:$0x3]
    %v127 = vlaneseq
    %v128 = vshrl.u32 %v127, 7
    %v129 = vsub.s32 0, %v128
    %v130 = vrot.slane %v125, %v129
    %v131 = vlaneseq
    %v132 = vshrl.u32 %v131, 7
    %v133 = vsub.s32 1, %v132
    %v134 = vrot.slane %v125, %v133
    %v169 = vunpack.c.l.b16 %v93
    %v170 = vunpack.c.h.b16 %v93
    %v171 = vunpack.c.l.b16 %v94
    %v172 = vunpack.c.h.b16 %v94
    %v173 = vunpack.c.l.b16 %v95
    %v174 = vunpack.c.h.b16 %v95
    %v175 = vunpack.c.l.b16 %v96
    %v176 = vunpack.c.h.b16 %v96
    %v177 = vunpack.c.l.b16 %v97
    %v178 = vunpack.c.h.b16 %v97
    %v179 = vunpack.c.l.b16 %v98
    %v180 = vunpack.c.h.b16 %v98
    %v181 = vunpack.c.l.b16 %v99
    %v182 = vunpack.c.h.b16 %v99
    %v183 = vunpack.c.l.b16 %v100
    %v184 = vunpack.c.h.b16 %v100
    %v185 = vunpack.c.l.b16 %v101
    %v186 = vunpack.c.h.b16 %v101
    %v187 = vunpack.c.l.b16 %v102
    %v188 = vunpack.c.h.b16 %v102
    %v189 = vunpack.c.l.b16 %v103
    %v190 = vunpack.c.h.b16 %v103
    %v191 = vunpack.c.l.b16 %v104
    %v192 = vunpack.c.h.b16 %v104
    %v193 = vunpack.c.l.b16 %v105
    %v194 = vunpack.c.h.b16 %v105
    %v195 = vunpack.c.l.b16 %v106
    %v196 = vunpack.c.h.b16 %v106
    %v197 = vunpack.c.l.b16 %v107
    %v198 = vunpack.c.h.b16 %v107
    %v199 = vunpack.c.l.b16 %v108
    %v200 = vunpack.c.h.b16 %v108
    %v201 = vunpack.c.l.b16 %v109
    %v202 = vunpack.c.h.b16 %v109
    %v203 = vunpack.c.l.b16 %v110
    %v204 = vunpack.c.h.b16 %v110
    %v205 = vunpack.c.l.b16 %v111
    %v206 = vunpack.c.h.b16 %v111
    %v207 = vunpack.c.l.b16 %v112
    %v208 = vunpack.c.h.b16 %v112
    %v209 = vunpack.c.l.b16 %v113
    %v210 = vunpack.c.h.b16 %v113
    %v211 = vunpack.c.l.b16 %v114
    %v212 = vunpack.c.h.b16 %v114
    %v213 = vunpack.c.l.b16 %v115
    %v214 = vunpack.c.h.b16 %v115
    %v215 = vunpack.c.l.b16 %v116
    %v216 = vunpack.c.h.b16 %v116
    %v217 = vunpack.c.l.b16 %v117
    %v218 = vunpack.c.h.b16 %v117
    %v219 = vunpack.c.l.b16 %v118
    %v220 = vunpack.c.h.b16 %v118
    %v221 = vunpack.c.l.b16 %v119
    %v222 = vunpack.c.h.b16 %v119
    %v223 = vunpack.c.l.b16 %v120
    %v224 = vunpack.c.h.b16 %v120
    %v225 = vunpack.c.l.b16 %v121
    %v226 = vunpack.c.h.b16 %v121
    %v227 = vunpack.c.l.b16 %v122
    %v228 = vunpack.c.h.b16 %v122
    %v229 = vunpack.c.l.b16 %v123
    %v230 = vunpack.c.h.b16 %v123
    %v231 = vunpack.c.l.b16 %v124
    %v232 = vunpack.c.h.b16 %v124
    %v233 = vpack.c.b16 %v171, %v169
    %v234 = vpack.c.b16 %v172, %v170
    %v235 = vpack.c.b16 %v175, %v173
    %v236 = vpack.c.b16 %v176, %v174
    %v237 = vpack.c.b16 %v179, %v177
    %v238 = vpack.c.b16 %v180, %v178
    %v239 = vpack.c.b16 %v183, %v181
    %v240 = vpack.c.b16 %v184, %v182
    %v241 = vpack.c.b16 %v187, %v185
    %v242 = vpack.c.b16 %v188, %v186
    %v243 = vpack.c.b16 %v191, %v189
    %v244 = vpack.c.b16 %v192, %v190
    %v245 = vpack.c.b16 %v195, %v193
    %v246 = vpack.c.b16 %v196, %v194
    %v247 = vpack.c.b16 %v199, %v197
    %v248 = vpack.c.b16 %v200, %v198
    %v249 = vpack.c.b16 %v203, %v201
    %v250 = vpack.c.b16 %v204, %v202
    %v251 = vpack.c.b16 %v207, %v205
    %v252 = vpack.c.b16 %v208, %v206
    %v253 = vpack.c.b16 %v211, %v209
    %v254 = vpack.c.b16 %v212, %v210
    %v255 = vpack.c.b16 %v215, %v213
    %v256 = vpack.c.b16 %v216, %v214
    %v257 = vpack.c.b16 %v219, %v217
    %v258 = vpack.c.b16 %v220, %v218
    %v259 = vpack.c.b16 %v223, %v221
    %v260 = vpack.c.b16 %v224, %v222
    %v261 = vpack.c.b16 %v227, %v225
    %v262 = vpack.c.b16 %v228, %v226
    %v263 = vpack.c.b16 %v231, %v229
    %v264 = vpack.c.b16 %v232, %v230
    %297 = vmatprep.subr.bf16.mxu0 %v248
    %298 = vmatpush1.bf16.msra.mxu0 %v247
    %299 = vmatprep.subr.bf16.mxu0 %v246
    %300 = vmatpush1.bf16.msra.mxu0 %v245
    %301 = vmatprep.subr.bf16.mxu0 %v244
    %302 = vmatpush1.bf16.msra.mxu0 %v243
    %303 = vmatprep.subr.bf16.mxu0 %v242
    %304 = vmatpush1.bf16.msra.mxu0 %v241
    %305 = vmatprep.subr.bf16.mxu0 %v240
    %306 = vmatpush1.bf16.msra.mxu0 %v239
    %307 = vmatprep.subr.bf16.mxu0 %v238
    %308 = vmatpush1.bf16.msra.mxu0 %v237
    %309 = vmatprep.subr.bf16.mxu0 %v236
    %310 = vmatpush1.bf16.msra.mxu0 %v235
    %311 = vmatprep.subr.bf16.mxu0 %v234
    %312 = vmatpush1.bf16.msra.mxu0 %v233
    %313 = vmatprep.subr.bf16.mxu0 %v264
    %314 = vmatpush2.bf16.msra.mxu0 %v263
    %315 = vmatprep.subr.bf16.mxu0 %v262
    %316 = vmatpush2.bf16.msra.mxu0 %v261
    %317 = vmatprep.subr.bf16.mxu0 %v260
    %318 = vmatpush2.bf16.msra.mxu0 %v259
    %319 = vmatprep.subr.bf16.mxu0 %v258
    %320 = vmatpush2.bf16.msra.mxu0 %v257
    %321 = vmatprep.subr.bf16.mxu0 %v256
    %322 = vmatpush2.bf16.msra.mxu0 %v255
    %323 = vmatprep.subr.bf16.mxu0 %v254
    %324 = vmatpush2.bf16.msra.mxu0 %v253
    %325 = vmatprep.subr.bf16.mxu0 %v252
    %326 = vmatpush2.bf16.msra.mxu0 %v251
    %327 = vmatprep.subr.bf16.mxu0 %v250
    %328 = vmatpush2.bf16.msra.mxu0 %v249
    %329 = vmatprep.mubr.bf16.mxu0 %v92
    %330 = vmatmul.mubr.bf16.gmra.mxu0 %v91
    %v331 = vpop.f32.mrf.mxu0
    %v332 = vadd.f32 %v130, %v331
    %v333 = vpop.f32.mrf.mxu0
    %v334 = vadd.f32 %v134, %v333
    %v335 = vpop.f32.mrf.mxu0
    %v336 = vpop.f32.mrf.mxu0
    %337 = vdwg.mxu0
    %v338 = vmax.f32 %v332, 0.0
    %v339 = vmax.f32 %v334, 0.0
    %v340 = vpack.c.bf16 %v338, %v338
    %v341 = vpack.c.bf16 %v339, %v339
    %v342 = vld [vmem:[#allocation4] sm:$0xf]
    %v343 = vld [vmem:[#allocation4 + $0x4] sm:$0xf]
    %v344 = vld [vmem:[#allocation4 + $0x8] sm:$0xf]
    %v345 = vld [vmem:[#allocation4 + $0xc] sm:$0xf]
    %v346 = vld [vmem:[#allocation4 + $0x10] sm:$0xf]
    %v347 = vld [vmem:[#allocation4 + $0x14] sm:$0xf]
    %v348 = vld [vmem:[#allocation4 + $0x18] sm:$0xf]
    %v349 = vld [vmem:[#allocation4 + $0x1c] sm:$0xf]
    %v350 = vld [vmem:[#allocation4 + $0x20] sm:$0xf]
    %v351 = vld [vmem:[#allocation4 + $0x24] sm:$0xf]
    %v352 = vld [vmem:[#allocation4 + $0x28] sm:$0xf]
    %v353 = vld [vmem:[#allocation4 + $0x2c] sm:$0xf]
    %v354 = vld [vmem:[#allocation4 + $0x30] sm:$0xf]
    %v355 = vld [vmem:[#allocation4 + $0x34] sm:$0xf]
    %v356 = vld [vmem:[#allocation4 + $0x38] sm:$0xf]
    %v357 = vld [vmem:[#allocation4 + $0x3c] sm:$0xf]
    %v358 = vld [vmem:[#allocation4 + $0x40] sm:$0xf]
    %v359 = vld [vmem:[#allocation4 + $0x44] sm:$0xf]
    %v360 = vld [vmem:[#allocation4 + $0x48] sm:$0xf]
    %v361 = vld [vmem:[#allocation4 + $0x4c] sm:$0xf]
    %v362 = vld [vmem:[#allocation4 + $0x50] sm:$0xf]
    %v363 = vld [vmem:[#allocation4 + $0x54] sm:$0xf]
    %v364 = vld [vmem:[#allocation4 + $0x58] sm:$0xf]
    %v365 = vld [vmem:[#allocation4 + $0x5c] sm:$0xf]
    %v366 = vld [vmem:[#allocation4 + $0x60] sm:$0xf]
    %v367 = vld [vmem:[#allocation4 + $0x64] sm:$0xf]
    %v368 = vld [vmem:[#allocation4 + $0x68] sm:$0xf]
    %v369 = vld [vmem:[#allocation4 + $0x6c] sm:$0xf]
    %v370 = vld [vmem:[#allocation4 + $0x70] sm:$0xf]
    %v371 = vld [vmem:[#allocation4 + $0x74] sm:$0xf]
    %v372 = vld [vmem:[#allocation4 + $0x78] sm:$0xf]
    %v373 = vld [vmem:[#allocation4 + $0x7c] sm:$0xf]
    %v374 = vld [vmem:[%s6] sm:$0x1]
    %v376 = vlaneseq
    %v377 = vshrl.u32 %v376, 7
    %v378 = vsub.s32 0, %v377
    %v379 = vrot.slane %v374, %v378
    %v413 = vunpack.c.l.b16 %v342
    %v414 = vunpack.c.l.b16 %v343
    %v415 = vunpack.c.l.b16 %v344
    %v416 = vunpack.c.l.b16 %v345
    %v417 = vunpack.c.l.b16 %v346
    %v418 = vunpack.c.l.b16 %v347
    %v419 = vunpack.c.l.b16 %v348
    %v420 = vunpack.c.l.b16 %v349
    %v421 = vunpack.c.l.b16 %v350
    %v422 = vunpack.c.l.b16 %v351
    %v423 = vunpack.c.l.b16 %v352
    %v424 = vunpack.c.l.b16 %v353
    %v425 = vunpack.c.l.b16 %v354
    %v426 = vunpack.c.l.b16 %v355
    %v427 = vunpack.c.l.b16 %v356
    %v428 = vunpack.c.l.b16 %v357
    %v429 = vunpack.c.l.b16 %v358
    %v430 = vunpack.c.l.b16 %v359
    %v431 = vunpack.c.l.b16 %v360
    %v432 = vunpack.c.l.b16 %v361
    %v433 = vunpack.c.l.b16 %v362
    %v434 = vunpack.c.l.b16 %v363
    %v435 = vunpack.c.l.b16 %v364
    %v436 = vunpack.c.l.b16 %v365
    %v437 = vunpack.c.l.b16 %v366
    %v438 = vunpack.c.l.b16 %v367
    %v439 = vunpack.c.l.b16 %v368
    %v440 = vunpack.c.l.b16 %v369
    %v441 = vunpack.c.l.b16 %v370
    %v442 = vunpack.c.l.b16 %v371
    %v443 = vunpack.c.l.b16 %v372
    %v444 = vunpack.c.l.b16 %v373
    %v445 = vpack.c.b16 %v414, %v413
    %v446 = vpack.c.b16 %v416, %v415
    %v447 = vpack.c.b16 %v418, %v417
    %v448 = vpack.c.b16 %v420, %v419
    %v449 = vpack.c.b16 %v422, %v421
    %v450 = vpack.c.b16 %v424, %v423
    %v451 = vpack.c.b16 %v426, %v425
    %v452 = vpack.c.b16 %v428, %v427
    %v453 = vpack.c.b16 %v430, %v429
    %v454 = vpack.c.b16 %v432, %v431
    %v455 = vpack.c.b16 %v434, %v433
    %v456 = vpack.c.b16 %v436, %v435
    %v457 = vpack.c.b16 %v438, %v437
    %v458 = vpack.c.b16 %v440, %v439
    %v459 = vpack.c.b16 %v442, %v441
    %v460 = vpack.c.b16 %v444, %v443
    %477 = vmatprep.subr.bf16.mxu0 0
    %478 = vmatpush1.bf16.msra.mxu0 %v452
    %479 = vmatprep.subr.bf16.mxu0 0
    %480 = vmatpush1.bf16.msra.mxu0 %v451
    %481 = vmatprep.subr.bf16.mxu0 0
    %482 = vmatpush1.bf16.msra.mxu0 %v450
    %483 = vmatprep.subr.bf16.mxu0 0
    %484 = vmatpush1.bf16.msra.mxu0 %v449
    %485 = vmatprep.subr.bf16.mxu0 0
    %486 = vmatpush1.bf16.msra.mxu0 %v448
    %487 = vmatprep.subr.bf16.mxu0 0
    %488 = vmatpush1.bf16.msra.mxu0 %v447
    %489 = vmatprep.subr.bf16.mxu0 0
    %490 = vmatpush1.bf16.msra.mxu0 %v446
    %491 = vmatprep.subr.bf16.mxu0 0
    %492 = vmatpush1.bf16.msra.mxu0 %v445
    %493 = vmatprep.subr.bf16.mxu0 0
    %494 = vmatpush2.bf16.msra.mxu0 %v460
    %495 = vmatprep.subr.bf16.mxu0 0
    %496 = vmatpush2.bf16.msra.mxu0 %v459
    %497 = vmatprep.subr.bf16.mxu0 0
    %498 = vmatpush2.bf16.msra.mxu0 %v458
    %499 = vmatprep.subr.bf16.mxu0 0
    %500 = vmatpush2.bf16.msra.mxu0 %v457
    %501 = vmatprep.subr.bf16.mxu0 0
    %502 = vmatpush2.bf16.msra.mxu0 %v456
    %503 = vmatprep.subr.bf16.mxu0 0
    %504 = vmatpush2.bf16.msra.mxu0 %v455
    %505 = vmatprep.subr.bf16.mxu0 0
    %506 = vmatpush2.bf16.msra.mxu0 %v454
    %507 = vmatprep.subr.bf16.mxu0 0
    %508 = vmatpush2.bf16.msra.mxu0 %v453
    %509 = vmatprep.mubr.bf16.mxu0 %v341
    %510 = vmatmul.mubr.bf16.gmra.mxu0 %v340
    %v511 = vpop.f32.mrf.mxu0
    %v512 = vadd.f32 %v379, %v511
    %v513 = vpop.f32.mrf.mxu0
    %v514 = vpop.f32.mrf.mxu0
    %v515 = vpop.f32.mrf.mxu0
    %516 = vdwg.mxu0
    %vm517 = vcmask 15360
    %518 = vst.msk [vmem:[%s7] sm:$0xff] %vm517, %v512
    // Predicated region
    $region38: #{tpu_custom_call.1} parent=1 // pred_check
      _
    $region39: #{tpu_custom_call.1} parent=1 // pred_check_branch
      %520 = sbr.rel (0) target = $region41
    $region40: #{tpu_custom_call.1} parent=1 // pred_region
      _
    $region41: #{tpu_custom_call.1} parent=1 // pred_fallthru
      _
    // Predicated region
    $region42: #{tpu_custom_call.1} parent=1 // pred_check
      _
    $region43: #{tpu_custom_call.1} parent=1 // pred_check_branch
      %522 = sbr.rel (0) target = $region45
    $region44: #{tpu_custom_call.1} parent=1 // pred_region
      _
    $region45: #{tpu_custom_call.1} parent=1 // pred_fallthru
      _
    %523 = vsyncpa [#allocation3], 1
    %524 = vsyncpa [#allocation5], 1

</llo_original>
